<compile_context>
chip_gen: v7x
topology: tpu7x:2x2x1
jax: 0.10.0
libtpu: 0.0.40
codegen_flags: <defaults>
</compile_context>

<pallas_src>
import functools

import jax
import jax.numpy as jnp
from jax import lax
from jax.experimental import pallas as pl
from jax.experimental.pallas import tpu as pltpu


def _round_up(x: int, m: int) -> int:
    return ((x + m - 1) // m) * m


def _pick_tile(dim: int, max_tile: int, align: int) -> int:
    """Largest aligned tile <= max_tile, balanced so padding waste stays small."""
    if dim <= max_tile:
        return _round_up(dim, align)
    nblocks = -(-dim // max_tile)
    return min(max_tile, _round_up(-(-dim // nblocks), align))


# ---------------------------------------------------------------------------
# Fast path: whole problem in one VMEM block (no grid, no padding, no slicing).
# ---------------------------------------------------------------------------
def _linear_small_kernel(x_ref, w_ref, b_ref, o_ref, *, compute_dtype):
    x = x_ref[...].astype(compute_dtype)
    w = w_ref[...].astype(compute_dtype)          # [N, K] (PyTorch layout)
    acc = lax.dot_general(
        x, w,
        dimension_numbers=(((1,), (1,)), ((), ())),   # x[M,K] . w[N,K]^T -> [M,N]
        preferred_element_type=jnp.float32,
    )
    o_ref[...] = (acc + b_ref[...].astype(jnp.float32)).astype(o_ref.dtype)


# ---------------------------------------------------------------------------
# General tiled path: grid (M/tm, N/tn, K/tk), resident f32 VMEM accumulator.
# ---------------------------------------------------------------------------
def _linear_tiled_kernel(x_ref, w_ref, b_ref, o_ref, acc_ref, *, compute_dtype):
    k = pl.program_id(2)

    @pl.when(k == 0)
    def _():
        acc_ref[...] = jnp.zeros_like(acc_ref)

    x = x_ref[...].astype(compute_dtype)          # (tm, tk)
    w = w_ref[...].astype(compute_dtype)          # (tn, tk)  -- weight stays [N, K]
    acc_ref[...] += lax.dot_general(
        x, w,
        dimension_numbers=(((1,), (1,)), ((), ())),
        preferred_element_type=jnp.float32,
    )

    @pl.when(k == pl.num_programs(2) - 1)
    def _():
        o_ref[...] = (acc_ref[...] + b_ref[...].astype(jnp.float32)).astype(o_ref.dtype)


@functools.partial(jax.jit, static_argnames=("compute_dtype",))
def lower_level_model_forward(x, weight, bias, *, compute_dtype=jnp.float32):
    """y = x @ weight.T + bias  (torch.nn.Linear semantics).

    x: [..., D_in], weight: [D_out, D_in] (PyTorch layout), bias: [D_out].
    compute_dtype: dtype fed to the MXU. Default f32 = exact nn.Linear parity
    (accumulation is f32 either way); pass jnp.bfloat16 for large compute-bound shapes.
    """
    lead = x.shape[:-1]
    K = x.shape[-1]
    N, Kw = weight.shape
    assert K == Kw, "weight must be [D_out, D_in] with D_in == x.shape[-1]"

    x2 = x.reshape(-1, K)
    M = x2.shape[0]
    b2 = bias.reshape(1, N)

    cost = pl.CostEstimate(
        flops=2 * M * N * K,
        bytes_accessed=(x2.size + weight.size + bias.size + M * N) * x.dtype.itemsize,
        transcendentals=0,
    )

    # ---------------- Small-shape fast path ----------------
    if M <= 512 and N <= 512 and K <= 512:
        out = pl.pallas_call(
            functools.partial(_linear_small_kernel, compute_dtype=compute_dtype),
            out_shape=jax.ShapeDtypeStruct((M, N), x.dtype),
            cost_estimate=cost,
        )(x2, weight, b2)
        return out.reshape(*lead, N)

    # ---------------- General tiled path ----------------
    tm = _pick_tile(M, 512, 8)
    tn = _pick_tile(N, 512, 128)
    tk = _pick_tile(K, 512, 128)
    Mp, Np, Kp = _round_up(M, tm), _round_up(N, tn), _round_up(K, tk)

    # v7x has 2 TensorCores sharded over the "parallel" grid axes: if both parallel
    # axes would have a single block, split M so the second core is not idle.
    if Mp // tm == 1 and Np // tn == 1 and M >= 16:
        tm = _round_up((M + 1) // 2, 8)
        Mp = _round_up(M, tm)

    x_p = x2 if (Mp == M and Kp == K) else jnp.pad(x2, ((0, Mp - M), (0, Kp - K)))
    w_p = weight if (Np == N and Kp == K) else jnp.pad(weight, ((0, Np - N), (0, Kp - K)))
    b_p = b2 if Np == N else jnp.pad(b2, ((0, 0), (0, Np - N)))

    grid = (Mp // tm, Np // tn, Kp // tk)

    out_p = pl.pallas_call(
        functools.partial(_linear_tiled_kernel, compute_dtype=compute_dtype),
        out_shape=jax.ShapeDtypeStruct((Mp, Np), x.dtype),
        grid_spec=pltpu.PrefetchScalarGridSpec(
            num_scalar_prefetch=0,
            grid=grid,
            in_specs=[
                pl.BlockSpec((tm, tk), lambda i, j, k: (i, k)),   # x
                pl.BlockSpec((tn, tk), lambda i, j, k: (j, k)),   # weight, [N, K] layout
                pl.BlockSpec((1, tn), lambda i, j, k: (0, j)),    # bias
            ],
            out_specs=pl.BlockSpec((tm, tn), lambda i, j, k: (i, j)),
            scratch_shapes=[pltpu.VMEM((tm, tn), jnp.float32)],
        ),
        compiler_params=pltpu.CompilerParams(
            dimension_semantics=("parallel", "parallel", "arbitrary"),
        ),
        cost_estimate=cost,
    )(x_p, w_p, b_p)

    return out_p[:M, :N].reshape(*lead, N)


if __name__ == "__main__":
    key = jax.random.PRNGKey(0)

    def make_case(k, batch, input_dim):
        kx, kw, kb = jax.random.split(k, 3)
        bound = 1.0 / (input_dim ** 0.5)
        x = jax.random.normal(kx, (batch, input_dim), dtype=jnp.float32)
        weight = jax.random.uniform(kw, (input_dim, input_dim),
                                    minval=-bound, maxval=bound, dtype=jnp.float32)
        bias = jax.random.uniform(kb, (input_dim,),
                                  minval=-bound, maxval=bound, dtype=jnp.float32)
        return x, weight, bias

    k1, k2 = jax.random.split(key)
    # Case 1: small spec-consistent shape (batch=8, input_dim=32) -> single-block fast path.
    # Case 2: moderate non-aligned shape (batch=64, input_dim=600) -> tiled path
    #         (padding, 2 N-blocks, 2 K-steps, accumulator init/finalize).
    cases = [make_case(k1, 8, 32), make_case(k2, 64, 600)]

    for x, weight, bias in cases:
        y = jax.block_until_ready(lower_level_model_forward(x, weight, bias))
        assert y.shape == (x.shape[0], weight.shape[0])

        y_ref = x @ weight.T + bias
        err = float(jnp.max(jnp.abs(y - y_ref)))
        assert jnp.allclose(y, y_ref, atol=2e-2, rtol=2e-2), err

    print("KERNEL_OK")
</pallas_src>

<mosaic_0001>
module attributes {stable_mosaic.version = 11 : i64} {
  func.func @_linear_small_kernel(%arg0: memref<8x32xf32, #tpu.memory_space<vmem>>, %arg1: memref<32x32xf32, #tpu.memory_space<vmem>>, %arg2: memref<1x32xf32, #tpu.memory_space<vmem>>, %arg3: memref<8x32xf32, #tpu.memory_space<vmem>>) attributes {dimension_semantics = [], scalar_prefetch = 0 : i64, scratch_operands = 0 : i64, tpu.core_type = #tpu.core_type<tc>} {
    %c0 = arith.constant 0 : index
    %c0_0 = arith.constant 0 : index
    %0 = vector.load %arg0[%c0, %c0_0] : memref<8x32xf32, #tpu.memory_space<vmem>>, vector<8x32xf32>
    %c0_1 = arith.constant 0 : index
    %c0_2 = arith.constant 0 : index
    %1 = vector.load %arg1[%c0_1, %c0_2] : memref<32x32xf32, #tpu.memory_space<vmem>>, vector<32x32xf32>
    %cst = arith.constant dense<0.000000e+00> : vector<8x32xf32>
    %2 = tpu.matmul %0, %1, %cst {dimension_numbers = #tpu.dot_dimension_numbers<[1], [1], [0], [0], [0, 0, 1, 0], [], []>} : vector<8x32xf32>, vector<32x32xf32>, vector<8x32xf32> -> vector<8x32xf32>
    %c0_3 = arith.constant 0 : index
    %c0_4 = arith.constant 0 : index
    %3 = vector.load %arg2[%c0_3, %c0_4] : memref<1x32xf32, #tpu.memory_space<vmem>>, vector<1x32xf32>
    %4 = vector.broadcast %3 : vector<1x32xf32> to vector<8x32xf32>
    %5 = arith.addf %2, %4 : vector<8x32xf32>
    %c0_5 = arith.constant 0 : index
    %c0_6 = arith.constant 0 : index
    %6 = vector.load %arg3[%c0_5, %c0_6] : memref<8x32xf32, #tpu.memory_space<vmem>>, vector<8x32xf32>
    tpu.vector_store %arg3[%c0_5, %c0_6], %5 {strides = array<i32>} : memref<8x32xf32, #tpu.memory_space<vmem>>, vector<8x32xf32>,
    return
  }
}

</mosaic_0001>

<llo_original>
// kernel: lower_level_model_forward.1
$region0: #{lower_level_model_forward.1}
  #allocation0 [shape = 'u32[]', space=smem, size = 0x4, offset = 0x4, fixed_abs, tag = 'smem constant byte address 0x4 - core index']
  #allocation1 [shape = 'u32[144,128]{1,0:T(1,128)}', space=vmem, size = 0x12000, scoped, tag = 'internal scratch']
  %s0 = inlined_call_operand.hbm [shape: f32[8,32], index: 0, kind: input, shape index: {}]
  %s1 = inlined_call_operand.hbm [shape: f32[32,32], index: 1, kind: input, shape index: {}]
  %s2 = inlined_call_operand.vmem [shape: f32[1,32], index: 2, kind: input, shape index: {}]
  %s3 = inlined_call_operand.hbm [shape: f32[8,32], index: 3, kind: output, shape index: {}]
  %s4 = sld [smem:[#allocation0]]
  $region30: #{lower_level_model_forward.1} parent=0
    _
  %s6 = ssub.s32 1, %s4
  %s7 = scalar_select 0, %s6, %s4
  $region1: #{lower_level_model_forward.1} parent=0
    #allocation2 [shape = 'u8[4096]{0}', space=vmem, size = 0x1000, scoped, tag = 'input window, operand 0, single buffered']
    #allocation3 [shape = 's32[1]{0}', space=sflag, size = 0x4, scoped, tag = 'scoped memory for lower_level_model_forward.1']
    #allocation4 [shape = 's32[1]{0}', space=sflag, size = 0x4, scoped, tag = 'scoped memory for lower_level_model_forward.1']
    #allocation5 [shape = 'u8[16384]{0}', space=vmem, size = 0x4000, scoped, tag = 'input window, operand 1, single buffered']
    #allocation6 [shape = 's32[1]{0}', space=sflag, size = 0x4, scoped, tag = 'scoped memory for lower_level_model_forward.1']
    #allocation7 [shape = 'u8[4096]{0}', space=vmem, size = 0x1000, scoped, tag = 'output window, operand 0, single buffered']
    %8 = vsyncpa [#allocation3], 0
    %9 = vsyncpa [#allocation6], 0
    %10 = vsyncpa [#allocation4], 0
    // Predicated region
    $region2: #{lower_level_model_forward.1} parent=1 // pred_check
      _
    $region3: #{lower_level_model_forward.1} parent=1 // pred_check_branch
      %12 = sbr.rel (0) target = $region5
    $region4: #{lower_level_model_forward.1} parent=1 // pred_region
      %s14 = ssub.s32 128, 128
      %15 = vsyncadd [#allocation3], %s14
      %s17 = sshll.u32 [#allocation2], 4
      %s18 = int_to_ptr.vmem [resolvable:$true] %s17
      %20 = dma.hbm_to_vmem [thread:$0]  %s0, 128, %s18, [#allocation3]
    $region5: #{lower_level_model_forward.1} parent=1 // pred_fallthru
      _
    // Predicated region
    $region6: #{lower_level_model_forward.1} parent=1 // pred_check
      _
    $region7: #{lower_level_model_forward.1} parent=1 // pred_check_branch
      %22 = sbr.rel (0) target = $region9
    $region8: #{lower_level_model_forward.1} parent=1 // pred_region
      %s24 = ssub.s32 512, 512
      %25 = vsyncadd [#allocation6], %s24
      %s26 = sshll.u32 [#allocation5], 4
      %s27 = int_to_ptr.vmem [resolvable:$true] %s26
      %32 = dma.hbm_to_vmem [thread:$0]  %s1, 512, %s27, [#allocation6], 128, 128, 8
    $region9: #{lower_level_model_forward.1} parent=1 // pred_fallthru
      _
    // Predicated region
    $region10: #{lower_level_model_forward.1} parent=1 // pred_check
      _
    $region11: #{lower_level_model_forward.1} parent=1 // pred_check_branch
      %34 = sbr.rel (0) target = $region13
    $region12: #{lower_level_model_forward.1} parent=1 // pred_region
      _
    $region13: #{lower_level_model_forward.1} parent=1 // pred_fallthru
      _
    // Predicated region
    $region14: #{lower_level_model_forward.1} parent=1 // pred_check
      _
    $region15: #{lower_level_model_forward.1} parent=1 // pred_check_branch
      %36 = sbr.rel (0) target = $region17
    $region16: #{lower_level_model_forward.1} parent=1 // pred_region
      %37 = dma.done [#allocation3], 128
    $region17: #{lower_level_model_forward.1} parent=1 // pred_fallthru
      _
    // Predicated region
    $region18: #{lower_level_model_forward.1} parent=1 // pred_check
      _
    $region19: #{lower_level_model_forward.1} parent=1 // pred_check_branch
      %39 = sbr.rel (0) target = $region21
    $region20: #{lower_level_model_forward.1} parent=1 // pred_region
      %40 = dma.done [#allocation6], 512
    $region21: #{lower_level_model_forward.1} parent=1 // pred_fallthru
      _
    %v41 = vld [vmem:[#allocation2] sm:$0xff]
    %v42 = vld [vmem:[#allocation5] sm:$0xff]
    %v43 = vld [vmem:[#allocation5 + $0x8] sm:$0xff]
    %v44 = vld [vmem:[#allocation5 + $0x10] sm:$0xff]
    %v45 = vld [vmem:[#allocation5 + $0x18] sm:$0xff]
    %v46 = vld [vmem:[%s2] sm:$0x1]
    %v48 = vlaneseq
    %v49 = vshrl.u32 %v48, 7
    %v50 = vsub.s32 0, %v49
    %v51 = vrot.slane %v46, %v50
    %vm53 = vcmask 261120
    %v55 = vsel %vm53, %v41, 0
    %v58 = vsel %vm53, %v42, 0
    %v61 = vsel %vm53, %v43, 0
    %v64 = vsel %vm53, %v44, 0
    %v67 = vsel %vm53, %v45, 0
    %69 = vmatprep.subr.mxu0 0.0
    %70 = vmatpush1.xpose.msra.mxu0 %v58
    %71 = vmatprep.subr.mxu0 0.0
    %72 = vmatpush1.xpose.msra.mxu0 %v61
    %73 = vmatprep.subr.mxu0 0.0
    %74 = vmatpush1.xpose.msra.mxu0 %v64
    %75 = vmatprep.subr.mxu0 0.0
    %76 = vmatpush1.xpose.msra.mxu0 %v67
    %77 = vmatprep.subr.mxu0 0.0
    %78 = vmatpush1.xpose.msra.mxu0 0.0
    %79 = vmatprep.subr.mxu0 0.0
    %80 = vmatpush1.xpose.msra.mxu0 0.0
    %81 = vmatprep.subr.mxu0 0.0
    %82 = vmatpush1.xpose.msra.mxu0 0.0
    %83 = vmatprep.subr.mxu0 0.0
    %84 = vmatpush1.xpose.msra.mxu0 0.0
    %85 = vmatprep.subr.mxu0 0.0
    %86 = vmatpush1.xpose.msra.mxu0 0.0
    %87 = vmatprep.subr.mxu0 0.0
    %88 = vmatpush1.xpose.msra.mxu0 0.0
    %89 = vmatprep.subr.mxu0 0.0
    %90 = vmatpush1.xpose.msra.mxu0 0.0
    %91 = vmatprep.subr.mxu0 0.0
    %92 = vmatpush1.xpose.msra.mxu0 0.0
    %93 = vmatprep.subr.mxu0 0.0
    %94 = vmatpush1.xpose.msra.mxu0 0.0
    %95 = vmatprep.subr.mxu0 0.0
    %96 = vmatpush1.xpose.msra.mxu0 0.0
    %97 = vmatprep.subr.mxu0 0.0
    %98 = vmatpush1.xpose.msra.mxu0 0.0
    %99 = vmatprep.subr.mxu0 0.0
    %100 = vmatpush1.xpose.msra.mxu0 0.0
    %101 = vmatprep.subr.mxu0 0.0
    %102 = vmatpush1.xpose.msra.mxu0 0.0
    %103 = vmatprep.subr.mxu0 0.0
    %104 = vmatpush1.xpose.msra.mxu0 0.0
    %105 = vmatprep.subr.mxu0 0.0
    %106 = vmatpush1.xpose.msra.mxu0 0.0
    %107 = vmatprep.subr.mxu0 0.0
    %108 = vmatpush1.xpose.msra.mxu0 0.0
    %109 = vmatprep.subr.mxu0 0.0
    %110 = vmatpush1.xpose.msra.mxu0 0.0
    %111 = vmatprep.subr.mxu0 0.0
    %112 = vmatpush1.xpose.msra.mxu0 0.0
    %113 = vmatprep.subr.mxu0 0.0
    %114 = vmatpush1.xpose.msra.mxu0 0.0
    %115 = vmatprep.subr.mxu0 0.0
    %116 = vmatpush1.xpose.msra.mxu0 0.0
    %117 = vmatprep.subr.mxu0 0.0
    %118 = vmatpush1.xpose.msra.mxu0 0.0
    %119 = vmatprep.subr.mxu0 0.0
    %120 = vmatpush1.xpose.msra.mxu0 0.0
    %121 = vmatprep.subr.mxu0 0.0
    %122 = vmatpush1.xpose.msra.mxu0 0.0
    %123 = vmatprep.subr.mxu0 0.0
    %124 = vmatpush1.xpose.msra.mxu0 0.0
    %125 = vmatprep.subr.mxu0 0.0
    %126 = vmatpush1.xpose.msra.mxu0 0.0
    %127 = vmatprep.subr.mxu0 0.0
    %128 = vmatpush1.xpose.msra.mxu0 0.0
    %129 = vmatprep.subr.mxu0 0.0
    %130 = vmatpush1.xpose.msra.mxu0 0.0
    %131 = vmatprep.subr.mxu0 0.0
    %132 = vmatpush1.xpose.msra.mxu0 0.0
    %133 = vmatprep.mubr.f32.mxu0 0.0
    %134 = vmatmul.mubr.f32.gmra.mrb[0].mxu0 %v55
    %v135 = vpop.f32.mrb[0].mxu0
    %v136 = vadd.f32 %v51, %v135
    %v137 = vpop.f32.mrb[0].mxu0
    %138 = vdwg.mxu0
    %139 = vst.msk [vmem:[#allocation7] sm:$0xff] %vm53, %v136
    // Predicated region
    $region22: #{lower_level_model_forward.1} parent=1 // pred_check
      _
    $region23: #{lower_level_model_forward.1} parent=1 // pred_check_branch
      %141 = sbr.rel (0) target = $region25
    $region24: #{lower_level_model_forward.1} parent=1 // pred_region
      %s143 = ssub.s32 128, 128
      %144 = vsyncadd [#allocation4], %s143
      %s146 = sshll.u32 [#allocation7], 4
      %s147 = int_to_ptr.vmem [resolvable:$true] %s146
      %149 = dma.vmem_to_hbm [thread:$0]  %s147, 128, %s3, [#allocation4]
    $region25: #{lower_level_model_forward.1} parent=1 // pred_fallthru
      _
    // Predicated region
    $region26: #{lower_level_model_forward.1} parent=1 // pred_check
      _
    $region27: #{lower_level_model_forward.1} parent=1 // pred_check_branch
      %151 = sbr.rel (0) target = $region29
    $region28: #{lower_level_model_forward.1} parent=1 // pred_region
      %152 = dma.done [#allocation4], 128
    $region29: #{lower_level_model_forward.1} parent=1 // pred_fallthru
      _
    %153 = vsyncpa [#allocation3], 1
    %154 = vsyncpa [#allocation6], 1
    %155 = vsyncpa [#allocation4], 1

</llo_original>
